<compile_context>
chip_gen: v7x
topology: tpu7x:2x2x1
jax: 0.10.0
libtpu: 0.0.40
codegen_flags: <defaults>
</compile_context>

<pallas_src>
import functools

import numpy as np
import jax
import jax.numpy as jnp
from jax.experimental import pallas as pl
from jax.experimental.pallas import tpu as pltpu

N_POOL = 21                                                # 1*1 + 2*2 + 4*4
TAPS = [(dh, dw) for dh in (-1, 0, 1) for dw in (-1, 0, 1)]  # 3x3 conv taps


# ---------------------------------------------------------------------------
# Kernel 1: CPSPPSELayer (1x1 conv + BN + ReLU + SPP + SE MLP + sigmoid)
# ---------------------------------------------------------------------------
def _se_kernel(x_ref, w1_ref, scale_ref, shift_ref, m_ref, wfc2_ref, out_ref,
               *, bb, hidden):
    C = wfc2_ref.shape[1]
    for b in range(bb):                                    # static unroll, bb <= 2
        xb = x_ref[b]                                      # (Cin, HW) bf16
        # 1x1 conv (bias=False): lane-dense (C, Cin) @ (Cin, HW), f32 accum.
        y = jnp.dot(w1_ref[...], xb, preferred_element_type=jnp.float32)
        # folded BatchNorm (inference affine) + ReLU, f32 epilogue.
        y = jnp.maximum(y * scale_ref[...] + shift_ref[...], 0.0)    # (C, HW)
        # SPP + fc1 pre-fused into M: h[j] = sum_{c,hw} y[c,hw] * M[j,c,hw]
        # -> pure VPU multiply+reduce (no pooling matmul, no 21-way loop).
        o = jnp.zeros((1, C), jnp.float32)
        for j in range(hidden):                            # hidden = C // reduction
            hj = jnp.sum(y * m_ref[j], axis=-1, keepdims=True)       # (C, 1)
            hj = jnp.sum(hj, axis=0, keepdims=True)                  # (1, 1)
            hj = jnp.maximum(hj, 0.0)                                # fc1 ReLU
            o = o + hj * wfc2_ref[j:j + 1, :]                        # fc2
        out_ref[b] = jax.nn.sigmoid(o)                               # (1, C)


# ---------------------------------------------------------------------------
# Kernel 2: main path (BN1+ReLU, 3x3 conv1, BN2+ReLU, 3x3 conv2, *gate, +sc)
# ---------------------------------------------------------------------------
def _block_kernel(x_ref, s1_ref, b1_ref, w1c_ref, s2_ref, b2_ref, w2c_ref,
                  wsc_ref, pse_ref, out_ref, col1_ref, col2_ref,
                  *, H, W, has_sc_conv):
    HW = H * W
    Cin = x_ref.shape[1]
    P = out_ref.shape[1]

    xb = x_ref[0]                                                    # (Cin, HW) f32
    # BN1 (folded inference affine) + ReLU.
    a1 = jnp.maximum(xb * s1_ref[...] + b1_ref[...], 0.0)            # (Cin, HW)

    idx = jax.lax.broadcasted_iota(jnp.int32, (1, HW), 1)
    row = idx // W
    col = idx % W

    def im2col(act, n_ch, col_ref):
        # Stack the 9 spatially shifted copies of `act` along sublanes so each
        # 3x3 conv is a single MXU matmul. Shifts are lane rolls (XLU) plus
        # border masks (zero mask == PyTorch padding=1).
        for t, (dh, dw) in enumerate(TAPS):
            d = dh * W + dw
            shifted = act if d == 0 else pltpu.roll(act, shift=(-d) % HW, axis=1)
            valid = ((row + dh >= 0) & (row + dh < H) &
                     (col + dw >= 0) & (col + dw < W))               # (1, HW)
            col_ref[t * n_ch:(t + 1) * n_ch, :] = jnp.where(
                valid, shifted, 0.0).astype(jnp.bfloat16)

    # conv1: 3x3, stride 1, pad 1  ->  (P, 9*Cin) @ (9*Cin, HW).
    im2col(a1, Cin, col1_ref)
    z1 = jnp.dot(w1c_ref[...], col1_ref[...],
                 preferred_element_type=jnp.float32)                 # (P, HW)
    # BN2 + ReLU.
    a2 = jnp.maximum(z1 * s2_ref[...] + b2_ref[...], 0.0)            # (P, HW)
    # conv2: 3x3, stride 1, pad 1  ->  (P, 9*P) @ (9*P, HW).
    im2col(a2, P, col2_ref)
    z2 = jnp.dot(w2c_ref[...], col2_ref[...],
                 preferred_element_type=jnp.float32)                 # (P, HW)
    # Shortcut branch.
    if has_sc_conv:
        sc = jnp.dot(wsc_ref[...], a1.astype(jnp.bfloat16),
                     preferred_element_type=jnp.float32)             # (P, HW)
    else:
        sc = xb                                                      # identity (Cin == P)
    # out = conv2(...) * SE_gate + shortcut.
    out_ref[0] = z2 * pse_ref[0] + sc


# ---------------------------------------------------------------------------
# Host-side parameter folding
# ---------------------------------------------------------------------------
def _make_pool_matrix(H, W):
    """Averaging masks for adaptive avg pool to 1x1, 2x2, 4x4 over flattened HW."""
    P = np.zeros((N_POOL, H * W), np.float32)
    P[0, :] = 1.0 / (H * W)
    r = 1
    for out in (2, 4):
        bh, bw = H // out, W // out
        for i in range(out):
            for j in range(out):
                m = np.zeros((H, W), np.float32)
                m[i * bh:(i + 1) * bh, j * bw:(j + 1) * bw] = 1.0 / (bh * bw)
                P[r] = m.reshape(-1)
                r += 1
    return P


def _regroup_fc1(w_fc1, C):
    """Torch fc1 weight (hidden, 21*C), concat order
    [pool1 (C), pool2 (4C, c-major), pool4 (16C, c-major)]
    -> (hidden, C, 21) indexed by (channel, pool position)."""
    hidden = w_fc1.shape[0]
    perm = np.zeros((C, N_POOL), np.int32)
    for c in range(C):
        perm[c, 0] = c
        for s in range(1, 5):
            perm[c, s] = C + c * 4 + (s - 1)
        for s in range(5, N_POOL):
            perm[c, s] = 5 * C + c * 16 + (s - 5)
    return w_fc1[:, perm.reshape(-1)].reshape(hidden, C, N_POOL)


def _fold_bn(gamma, beta, mean, var, eps=1e-5):
    scale = gamma / jnp.sqrt(var + eps)
    shift = beta - mean * scale
    return scale.astype(jnp.float32), shift.astype(jnp.float32)


# ---------------------------------------------------------------------------
# Wrappers
# ---------------------------------------------------------------------------
def cpspp_se_layer(x_nchw, p):
    """CPSPPSELayer forward: (B, Cin, H, W) -> (B, C, 1, 1) SE gate."""
    B, Cin, H, W = x_nchw.shape
    HW = H * W
    C = p["w_conv"].shape[0]
    hidden = p["w_fc1"].shape[0]
    # TODO(synk): AdaptiveAvgPool2d uneven (floor/ceil) bins when H or W is not
    # a multiple of 4 are not reproduced.
    assert H % 4 == 0 and W % 4 == 0
    # TODO(synk): the in_channel == channel variant (SE layer without conv1/BN)
    # is not wired up; this block configuration always uses the conv path.

    # Lane-dense layout (channels on sublanes, HW on lanes): no transpose, and
    # x / w1 ship to the MXU as bf16 with f32 accumulation.
    x_se = x_nchw.reshape(B, Cin, HW).astype(jnp.bfloat16)
    w1 = p["w_conv"][:, :, 0, 0].astype(jnp.bfloat16)                # (C, Cin)
    scale, shift = _fold_bn(p["bn_gamma"], p["bn_beta"], p["bn_mean"], p["bn_var"])
    scale = scale.reshape(C, 1)
    shift = shift.reshape(C, 1)

    # Pre-fuse SPP pooling and fc1 on the host:
    #   M[j, c, hw] = sum_s fc1[j, feat_col(c, s)] * pool_mask[s, hw]
    pmat = jnp.asarray(_make_pool_matrix(H, W))                      # (21, HW)
    w1r = _regroup_fc1(p["w_fc1"], C)                                # (hidden, C, 21)
    m = jnp.einsum("hcs,sp->hcp", w1r, pmat,
                   precision=jax.lax.Precision.HIGHEST).astype(jnp.float32)
    wfc2 = p["w_fc2"].T.astype(jnp.float32)                          # (hidden, C)

    # Batch grid: at most 2 grid steps -> near-collapsed on single-TC v5e/v6e
    # (per-step ~0.35us overhead mostly gone) while v7x's two TensorCores each
    # still get one "parallel" step when B >= 2.
    nb = 2 if B >= 2 else 1
    bb = -(-B // nb)
    Bp = nb * bb
    if Bp != B:
        x_se = jnp.pad(x_se, ((0, Bp - B), (0, 0), (0, 0)))

    flops = Bp * (2 * C * Cin * HW + 3 * C * HW + 2 * hidden * C * HW + 4 * hidden * C)
    bytes_accessed = (x_se.size * 2 + w1.size * 2 + 2 * C * 4 +
                      m.size * 4 + wfc2.size * 4 + Bp * C * 4)

    kernel = functools.partial(_se_kernel, bb=bb, hidden=hidden)
    out = pl.pallas_call(
        kernel,
        out_shape=jax.ShapeDtypeStruct((Bp, 1, C), jnp.float32),
        grid=(nb,),
        in_specs=[
            pl.BlockSpec((bb, Cin, HW), lambda g: (g, 0, 0)),
            pl.BlockSpec((C, Cin), lambda g: (0, 0)),
            pl.BlockSpec((C, 1), lambda g: (0, 0)),
            pl.BlockSpec((C, 1), lambda g: (0, 0)),
            pl.BlockSpec((hidden, C, HW), lambda g: (0, 0, 0)),
            pl.BlockSpec((hidden, C), lambda g: (0, 0)),
        ],
        out_specs=pl.BlockSpec((bb, 1, C), lambda g: (g, 0, 0)),
        compiler_params=pltpu.CompilerParams(
            dimension_semantics=("parallel",)),
        cost_estimate=pl.CostEstimate(flops=flops, transcendentals=Bp * C,
                                      bytes_accessed=bytes_accessed),
    )(x_se, w1, scale, shift, m, wfc2)
    return out[:B].reshape(B, C, 1, 1)


def cpspp_se_preact_block(x, params, stride=1):
    """CPSPPSEPreActBlock forward: (B, in_planes, H, W) -> (B, planes, H, W)."""
    if stride != 1:
        # TODO(synk): stride != 1 (downsampled conv1 + strided 1x1 shortcut)
        # is not implemented in the Pallas path.
        raise NotImplementedError("stride != 1 not implemented")
    B, Cin, H, W = x.shape
    HW = H * W
    P = params["conv1_w"].shape[0]
    has_sc_conv = (stride != 1) or (Cin != P)

    # SE gate is computed from the *raw* input (matches PyTorch forward).
    pse = cpspp_se_layer(x, params["se"])                            # (B, P, 1, 1)
    pse_in = pse.reshape(B, P, 1)

    s1, b1 = _fold_bn(params["bn1_gamma"], params["bn1_beta"],
                      params["bn1_mean"], params["bn1_var"])
    s2, b2 = _fold_bn(params["bn2_gamma"], params["bn2_beta"],
                      params["bn2_mean"], params["bn2_var"])
    # im2col weight layout: column = tap * (#in channels) + in_channel, tap = kh*3+kw.
    w1c = params["conv1_w"].transpose(0, 2, 3, 1).reshape(P, 9 * Cin).astype(jnp.bfloat16)
    w2c = params["conv2_w"].transpose(0, 2, 3, 1).reshape(P, 9 * P).astype(jnp.bfloat16)
    if has_sc_conv:
        wsc = params["sc_w"][:, :, 0, 0].astype(jnp.bfloat16)        # (P, Cin)
    else:
        wsc = jnp.zeros((P, Cin), jnp.bfloat16)                      # unused

    x_flat = x.reshape(B, Cin, HW).astype(jnp.float32)               # lane-dense, no transpose

    flops = B * HW * 2 * (9 * Cin * P + 9 * P * P + (Cin * P if has_sc_conv else 0))
    bytes_accessed = (x_flat.size * 4 + w1c.size * 2 + w2c.size * 2 + wsc.size * 2 +
                      2 * (Cin + P) * 4 + pse_in.size * 4 + B * P * HW * 4)

    kernel = functools.partial(_block_kernel, H=H, W=W, has_sc_conv=has_sc_conv)
    # TODO(synk): at large H*W / channel counts add an HW (reduction) grid axis
    # and cap block sizes for v7x's smaller 64 MiB VMEM; at these sizes every
    # operand fits trivially.
    out = pl.pallas_call(
        kernel,
        out_shape=jax.ShapeDtypeStruct((B, P, HW), jnp.float32),
        grid=(B,),
        in_specs=[
            pl.BlockSpec((1, Cin, HW), lambda b: (b, 0, 0)),
            pl.BlockSpec((Cin, 1), lambda b: (0, 0)),
            pl.BlockSpec((Cin, 1), lambda b: (0, 0)),
            pl.BlockSpec((P, 9 * Cin), lambda b: (0, 0)),
            pl.BlockSpec((P, 1), lambda b: (0, 0)),
            pl.BlockSpec((P, 1), lambda b: (0, 0)),
            pl.BlockSpec((P, 9 * P), lambda b: (0, 0)),
            pl.BlockSpec((P, Cin), lambda b: (0, 0)),
            pl.BlockSpec((1, P, 1), lambda b: (b, 0, 0)),
        ],
        out_specs=pl.BlockSpec((1, P, HW), lambda b: (b, 0, 0)),
        scratch_shapes=[pltpu.VMEM((9 * Cin, HW), jnp.bfloat16),
                        pltpu.VMEM((9 * P, HW), jnp.bfloat16)],
        compiler_params=pltpu.CompilerParams(
            dimension_semantics=("parallel",)),
        cost_estimate=pl.CostEstimate(flops=flops, transcendentals=0,
                                      bytes_accessed=bytes_accessed),
    )(x_flat, s1.reshape(Cin, 1), b1.reshape(Cin, 1), w1c,
      s2.reshape(P, 1), b2.reshape(P, 1), w2c, wsc, pse_in)
    return out.reshape(B, P, H, W)


# ---------------------------------------------------------------------------
# Pure-JAX reference (replica of the PyTorch forward) for verification
# ---------------------------------------------------------------------------
def _se_reference(x, p):
    eps = 1e-5
    w = p["w_conv"][:, :, 0, 0]
    y = jnp.einsum("bihw,oi->bohw", x, w, precision=jax.lax.Precision.HIGHEST)
    scale = p["bn_gamma"] / jnp.sqrt(p["bn_var"] + eps)
    shift = p["bn_beta"] - p["bn_mean"] * scale
    y = jnp.maximum(y * scale[None, :, None, None] + shift[None, :, None, None], 0.0)
    B, C, H, W = y.shape
    y1 = y.mean(axis=(2, 3))
    y2 = y.reshape(B, C, 2, H // 2, 2, W // 2).mean(axis=(3, 5)).reshape(B, 4 * C)
    y3 = y.reshape(B, C, 4, H // 4, 4, W // 4).mean(axis=(3, 5)).reshape(B, 16 * C)
    feat = jnp.concatenate([y1, y2, y3], axis=1)
    h = jnp.maximum(jnp.dot(feat, p["w_fc1"].T,
                            precision=jax.lax.Precision.HIGHEST), 0.0)
    o = jax.nn.sigmoid(jnp.dot(h, p["w_fc2"].T,
                               precision=jax.lax.Precision.HIGHEST))
    return o.reshape(B, C, 1, 1)


def _conv3x3(x, w):
    return jax.lax.conv_general_dilated(
        x, w, window_strides=(1, 1), padding=((1, 1), (1, 1)),
        dimension_numbers=("NCHW", "OIHW", "NCHW"),
        precision=jax.lax.Precision.HIGHEST)


def _bn(x, gamma, beta, mean, var, eps=1e-5):
    return ((x - mean[None, :, None, None]) / jnp.sqrt(var[None, :, None, None] + eps)
            * gamma[None, :, None, None] + beta[None, :, None, None])


def block_reference(x, params):
    pse = _se_reference(x, params["se"])
    a1 = jnp.maximum(_bn(x, params["bn1_gamma"], params["bn1_beta"],
                         params["bn1_mean"], params["bn1_var"]), 0.0)
    Cin = x.shape[1]
    P = params["conv1_w"].shape[0]
    if Cin != P:
        shortcut = jnp.einsum("bihw,oi->bohw", a1, params["sc_w"][:, :, 0, 0],
                              precision=jax.lax.Precision.HIGHEST)
    else:
        shortcut = x
    out = _conv3x3(a1, params["conv1_w"])
    out = jnp.maximum(_bn(out, params["bn2_gamma"], params["bn2_beta"],
                          params["bn2_mean"], params["bn2_var"]), 0.0)
    out = _conv3x3(out, params["conv2_w"])
    return out * pse + shortcut


if __name__ == "__main__":
    B, IN_PLANES, PLANES, REDUCTION = 2, 16, 32, 16
    H = W = 16
    C = PLANES                        # expansion = 1
    HIDDEN = C // REDUCTION           # 2

    key = jax.random.PRNGKey(0)
    ks = jax.random.split(key, 19)

    def rn(k, shape, s=0.1):
        return s * jax.random.normal(k, shape, jnp.float32)

    params = {
        "bn1_gamma": 1.0 + rn(ks[0], (IN_PLANES,)),
        "bn1_beta": rn(ks[1], (IN_PLANES,)),
        "bn1_mean": rn(ks[2], (IN_PLANES,), 0.05),
        "bn1_var": jnp.abs(1.0 + rn(ks[3], (IN_PLANES,))),
        "conv1_w": rn(ks[4], (PLANES, IN_PLANES, 3, 3)),
        "bn2_gamma": 1.0 + rn(ks[5], (PLANES,)),
        "bn2_beta": rn(ks[6], (PLANES,)),
        "bn2_mean": rn(ks[7], (PLANES,), 0.05),
        "bn2_var": jnp.abs(1.0 + rn(ks[8], (PLANES,))),
        "conv2_w": rn(ks[9], (PLANES, PLANES, 3, 3)),
        "sc_w": rn(ks[10], (PLANES, IN_PLANES, 1, 1)),
        "se": {
            "w_conv": rn(ks[11], (C, IN_PLANES, 1, 1)),
            "bn_gamma": 1.0 + rn(ks[12], (C,)),
            "bn_beta": rn(ks[13], (C,)),
            "bn_mean": rn(ks[14], (C,), 0.05),
            "bn_var": jnp.abs(1.0 + rn(ks[15], (C,))),
            "w_fc1": rn(ks[16], (HIDDEN, N_POOL * C)),
            "w_fc2": rn(ks[17], (C, HIDDEN)),
        },
    }
    x = jax.random.normal(ks[18], (B, IN_PLANES, H, W), jnp.float32)

    out = jax.block_until_ready(cpspp_se_preact_block(x, params, stride=1))
    assert out.shape == (B, PLANES, H, W), out.shape

    ref = jax.block_until_ready(block_reference(x, params))
    # bf16 MXU operands (f32 accumulation) -> allow ~1% tolerance.
    if not np.allclose(np.asarray(out), np.asarray(ref), atol=2e-2, rtol=2e-2):
        err = float(np.max(np.abs(np.asarray(out) - np.asarray(ref))))
        raise AssertionError(f"Pallas kernel does not match reference (max err {err})")
    print("KERNEL_OK")
</pallas_src>

<mosaic_0001>
module attributes {stable_mosaic.version = 11 : i64} {
  func.func @_se_kernel(%arg0: i32, %arg1: memref<1x16x256xbf16, #tpu.memory_space<vmem>>, %arg2: memref<32x16xbf16, #tpu.memory_space<vmem>>, %arg3: memref<32x1xf32, #tpu.memory_space<vmem>>, %arg4: memref<32x1xf32, #tpu.memory_space<vmem>>, %arg5: memref<2x32x256xf32, #tpu.memory_space<vmem>>, %arg6: memref<2x32xf32, #tpu.memory_space<vmem>>, %arg7: memref<1x1x32xf32, #tpu.memory_space<vmem>>) attributes {dimension_semantics = [#tpu.dimension_semantics<parallel>], iteration_bounds = array<i64: 2>, scalar_prefetch = 0 : i64, scratch_operands = 0 : i64, tpu.core_type = #tpu.core_type<tc>, window_params = [{transform_indices = @transform_0, window_bounds = array<i64: 1, 16, 256>}, {pipeline_mode = #tpu.pipeline_mode<synchronous>, transform_indices = @transform_1, window_bounds = array<i64: 32, 16>}, {pipeline_mode = #tpu.pipeline_mode<synchronous>, transform_indices = @transform_2, window_bounds = array<i64: 32, 1>}, {pipeline_mode = #tpu.pipeline_mode<synchronous>, transform_indices = @transform_3, window_bounds = array<i64: 32, 1>}, {pipeline_mode = #tpu.pipeline_mode<synchronous>, transform_indices = @transform_4, window_bounds = array<i64: 2, 32, 256>}, {pipeline_mode = #tpu.pipeline_mode<synchronous>, transform_indices = @transform_5, window_bounds = array<i64: 2, 32>}, {transform_indices = @transform_6, window_bounds = array<i64: 1, 1, 32>}]} {
    %c0 = arith.constant 0 : index
    %c0_0 = arith.constant 0 : index
    %c0_1 = arith.constant 0 : index
    %0 = vector.load %arg1[%c0, %c0_0, %c0_1] : memref<1x16x256xbf16, #tpu.memory_space<vmem>>, vector<1x16x256xbf16>
    %1 = vector.shape_cast %0 : vector<1x16x256xbf16> to vector<16x256xbf16>
    %c0_2 = arith.constant 0 : index
    %c0_3 = arith.constant 0 : index
    %2 = vector.load %arg2[%c0_2, %c0_3] : memref<32x16xbf16, #tpu.memory_space<vmem>>, vector<32x16xbf16>
    %cst = arith.constant dense<0.000000e+00> : vector<32x256xf32>
    %3 = tpu.matmul %2, %1, %cst {dimension_numbers = #tpu.dot_dimension_numbers<[1], [0], [0], [1], [0, 0, 1, 1], [], []>} : vector<32x16xbf16>, vector<16x256xbf16>, vector<32x256xf32> -> vector<32x256xf32>
    %c0_4 = arith.constant 0 : index
    %c0_5 = arith.constant 0 : index
    %4 = vector.load %arg3[%c0_4, %c0_5] : memref<32x1xf32, #tpu.memory_space<vmem>>, vector<32x1xf32>
    %5 = vector.broadcast %4 : vector<32x1xf32> to vector<32x256xf32>
    %6 = arith.mulf %3, %5 : vector<32x256xf32>
    %c0_6 = arith.constant 0 : index
    %c0_7 = arith.constant 0 : index
    %7 = vector.load %arg4[%c0_6, %c0_7] : memref<32x1xf32, #tpu.memory_space<vmem>>, vector<32x1xf32>
    %8 = vector.broadcast %7 : vector<32x1xf32> to vector<32x256xf32>
    %9 = arith.addf %6, %8 : vector<32x256xf32>
    %cst_8 = arith.constant 0.000000e+00 : f32
    %10 = vector.broadcast %cst_8 : f32 to vector<32x256xf32>
    %11 = arith.maximumf %9, %10 : vector<32x256xf32>
    %cst_9 = arith.constant 0.000000e+00 : f32
    %12 = vector.broadcast %cst_9 : f32 to vector<1x32xf32>
    %c0_10 = arith.constant 0 : index
    %c0_11 = arith.constant 0 : index
    %c0_12 = arith.constant 0 : index
    %13 = vector.load %arg5[%c0_10, %c0_11, %c0_12] : memref<2x32x256xf32, #tpu.memory_space<vmem>>, vector<1x32x256xf32>
    %14 = vector.shape_cast %13 : vector<1x32x256xf32> to vector<32x256xf32>
    %15 = arith.mulf %11, %14 : vector<32x256xf32>
    %cst_13 = arith.constant dense<0.000000e+00> : vector<32xf32>
    %16 = vector.multi_reduction <add>, %15, %cst_13 [1] : vector<32x256xf32> to vector<32xf32>
    %17 = vector.shape_cast %16 : vector<32xf32> to vector<32x1xf32>
    %cst_14 = arith.constant dense<0.000000e+00> : vector<1xf32>
    %18 = vector.multi_reduction <add>, %17, %cst_14 [0] : vector<32x1xf32> to vector<1xf32>
    %19 = vector.shape_cast %18 : vector<1xf32> to vector<1x1xf32>
    %cst_15 = arith.constant 0.000000e+00 : f32
    %20 = vector.broadcast %cst_15 : f32 to vector<1x1xf32>
    %21 = arith.maximumf %19, %20 : vector<1x1xf32>
    %c0_16 = arith.constant 0 : index
    %c0_17 = arith.constant 0 : index
    %22 = vector.load %arg6[%c0_16, %c0_17] : memref<2x32xf32, #tpu.memory_space<vmem>>, vector<1x32xf32>
    %23 = vector.broadcast %21 : vector<1x1xf32> to vector<1x32xf32>
    %24 = arith.mulf %23, %22 : vector<1x32xf32>
    %25 = arith.addf %12, %24 : vector<1x32xf32>
    %c1 = arith.constant 1 : index
    %c0_18 = arith.constant 0 : index
    %c0_19 = arith.constant 0 : index
    %26 = vector.load %arg5[%c1, %c0_18, %c0_19] : memref<2x32x256xf32, #tpu.memory_space<vmem>>, vector<1x32x256xf32>
    %27 = vector.shape_cast %26 : vector<1x32x256xf32> to vector<32x256xf32>
    %28 = arith.mulf %11, %27 : vector<32x256xf32>
    %cst_20 = arith.constant dense<0.000000e+00> : vector<32xf32>
    %29 = vector.multi_reduction <add>, %28, %cst_20 [1] : vector<32x256xf32> to vector<32xf32>
    %30 = vector.shape_cast %29 : vector<32xf32> to vector<32x1xf32>
    %cst_21 = arith.constant dense<0.000000e+00> : vector<1xf32>
    %31 = vector.multi_reduction <add>, %30, %cst_21 [0] : vector<32x1xf32> to vector<1xf32>
    %32 = vector.shape_cast %31 : vector<1xf32> to vector<1x1xf32>
    %cst_22 = arith.constant 0.000000e+00 : f32
    %33 = vector.broadcast %cst_22 : f32 to vector<1x1xf32>
    %34 = arith.maximumf %32, %33 : vector<1x1xf32>
    %c1_23 = arith.constant 1 : index
    %c0_24 = arith.constant 0 : index
    %35 = vector.load %arg6[%c1_23, %c0_24] : memref<2x32xf32, #tpu.memory_space<vmem>>, vector<1x32xf32>
    %36 = vector.broadcast %34 : vector<1x1xf32> to vector<1x32xf32>
    %37 = arith.mulf %36, %35 : vector<1x32xf32>
    %38 = arith.addf %25, %37 : vector<1x32xf32>
    %39 = arith.negf %38 : vector<1x32xf32>
    %40 = math.exp %39 : vector<1x32xf32>
    %cst_25 = arith.constant 1.000000e+00 : f32
    %41 = vector.broadcast %cst_25 : f32 to vector<1x32xf32>
    %42 = arith.addf %41, %40 : vector<1x32xf32>
    %43 = arith.divf %41, %42 : vector<1x32xf32>
    %c0_26 = arith.constant 0 : index
    %c0_27 = arith.constant 0 : index
    %c0_28 = arith.constant 0 : index
    %44 = vector.load %arg7[%c0_26, %c0_27, %c0_28] : memref<1x1x32xf32, #tpu.memory_space<vmem>>, vector<1x1x32xf32>
    %45 = vector.shape_cast %44 : vector<1x1x32xf32> to vector<1x32xf32>
    %46 = vector.shape_cast %43 : vector<1x32xf32> to vector<1x1x32xf32>
    tpu.vector_store %arg7[%c0_26, %c0_27, %c0_28], %46 {strides = array<i32>} : memref<1x1x32xf32, #tpu.memory_space<vmem>>, vector<1x1x32xf32>,
    return
  }
  func.func @transform_0(%arg0: i32) -> (i32, i32, i32) {
    %c0_i32 = arith.constant 0 : i32
    %c0_i32_0 = arith.constant 0 : i32
    %c0_i32_1 = arith.constant 0 : i32
    return %arg0, %c0_i32, %c0_i32_0 : i32, i32, i32
  }
  func.func @transform_1(%arg0: i32) -> (i32, i32) {
    %c0_i32 = arith.constant 0 : i32
    %c0_i32_0 = arith.constant 0 : i32
    %c0_i32_1 = arith.constant 0 : i32
    return %c0_i32, %c0_i32_0 : i32, i32
  }
  func.func @transform_2(%arg0: i32) -> (i32, i32) {
    %c0_i32 = arith.constant 0 : i32
    %c0_i32_0 = arith.constant 0 : i32
    %c0_i32_1 = arith.constant 0 : i32
    return %c0_i32, %c0_i32_0 : i32, i32
  }
  func.func @transform_3(%arg0: i32) -> (i32, i32) {
    %c0_i32 = arith.constant 0 : i32
    %c0_i32_0 = arith.constant 0 : i32
    %c0_i32_1 = arith.constant 0 : i32
    return %c0_i32, %c0_i32_0 : i32, i32
  }
  func.func @transform_4(%arg0: i32) -> (i32, i32, i32) {
    %c0_i32 = arith.constant 0 : i32
    %c0_i32_0 = arith.constant 0 : i32
    %c0_i32_1 = arith.constant 0 : i32
    %c0_i32_2 = arith.constant 0 : i32
    return %c0_i32, %c0_i32_0, %c0_i32_1 : i32, i32, i32
  }
  func.func @transform_5(%arg0: i32) -> (i32, i32) {
    %c0_i32 = arith.constant 0 : i32
    %c0_i32_0 = arith.constant 0 : i32
    %c0_i32_1 = arith.constant 0 : i32
    return %c0_i32, %c0_i32_0 : i32, i32
  }
  func.func @transform_6(%arg0: i32) -> (i32, i32, i32) {
    %c0_i32 = arith.constant 0 : i32
    %c0_i32_0 = arith.constant 0 : i32
    %c0_i32_1 = arith.constant 0 : i32
    return %arg0, %c0_i32, %c0_i32_0 : i32, i32, i32
  }
}

</mosaic_0001>

<llo_original>
// kernel: tpu_custom_call.1
$region0: #{tpu_custom_call.1}
  #allocation0 [shape = 'u32[]', space=smem, size = 0x4, offset = 0x4, fixed_abs, tag = 'smem constant byte address 0x4 - core index']
  #allocation1 [shape = 'u32[144,128]{1,0:T(1,128)}', space=vmem, size = 0x12000, scoped, tag = 'internal scratch']
  %s0 = inlined_call_operand.vmem [shape: bf16[2,16,256], index: 0, kind: input, shape index: {}]
  %s1 = inlined_call_operand.vmem [shape: bf16[32,16], index: 1, kind: input, shape index: {}]
  %s2 = inlined_call_operand.vmem [shape: f32[32,1], index: 2, kind: input, shape index: {}]
  %s3 = inlined_call_operand.vmem [shape: f32[32,1], index: 3, kind: input, shape index: {}]
  %s4 = inlined_call_operand.hbm [shape: f32[2,32,256], index: 4, kind: input, shape index: {}]
  %s5 = inlined_call_operand.vmem [shape: f32[2,32], index: 5, kind: input, shape index: {}]
  %s6 = inlined_call_operand.hbm [shape: f32[2,1,32], index: 6, kind: output, shape index: {}]
  %s7 = sld [smem:[#allocation0]]
  $region61: #{tpu_custom_call.1} parent=0
    _
  %s9 = ssub.s32 1, %s7
  %s10 = scalar_select 0, %s9, %s7
  $region1: #{tpu_custom_call.1} parent=0
    #allocation2 [shape = 'u8[65536]{0}', space=vmem, size = 0x10000, scoped, tag = 'input window, operand 4, single buffered']
    #allocation3 [shape = 's32[2]{0}', space=sflag, size = 0x8, scoped, tag = 'scoped memory for tpu_custom_call.1']
    #allocation4 [shape = 's32[2]{0}', space=sflag, size = 0x8, scoped, tag = 'scoped memory for tpu_custom_call.1']
    #allocation5 [shape = 'u8[1024]{0}', space=vmem, size = 0x400, scoped, tag = 'output window, operand 0']
    %11 = vsyncpa [#allocation3], 0
    %12 = vsyncpa [#allocation4], 0
    %s13 = scalar_lea.sflag [#allocation4], 1
    %14 = vsyncpa %s13, 0
    loop: start=0, step=1, limit=4
    $region2: #{tpu_custom_call.1} parent=1 // loop_pre_header
      _
    $region3: #{tpu_custom_call.1} parent=1 // loop_header
      %s16 = sphi 0, %s20
      %p17 = scmp.ge.s32.totalorder %s16, 4
      %s26 = sphi 0, %s28
      %s29 = sphi 0, %s26
      %s30 = sphi 0, %s29
      %s46 = sphi 0, %s30
      %s50 = sphi 0, %s50
      %s52 = sphi 0, %s50
      %s53 = sphi 0, %s52
      %s67 = sphi 0, %s53
      %s71 = sphi 0, %s71
      %s73 = sphi 0, %s71
      %s74 = sphi 0, %s73
      %s88 = sphi 0, %s74
      %s92 = sphi 0, %s92
      %s94 = sphi 0, %s92
      %s95 = sphi 0, %s94
      %s109 = sphi 0, %s95
      %s113 = sphi 0, %s113
      %s115 = sphi 0, %s113
      %s116 = sphi 0, %s115
      %s130 = sphi 0, %s116
      %s134 = sphi 0, %s134
      %s136 = sphi 0, %s134
      %s137 = sphi 0, %s136
      %s151 = sphi 0, %s137
      %s157 = sphi 0, %s159
      %s160 = sphi 0, %s157
      %s161 = sphi 0, %s160
      %s177 = sphi 0, %s161
    $region4: #{tpu_custom_call.1} parent=1 // loop_header_branch
      %19 = sbr.rel (%p17) target = $region8
    $region5: #{tpu_custom_call.1} parent=1 // loop_body
      %s21 = ssub.s32 %s16, 1
      %s22 = ssub.s32 %s16, 2
      %s23 = sadd.s32 %s16, 1
      %s24 = ssub.s32 %s16, %s23
      %p25 = scmp.eq.s32.totalorder %s24, 0
      %s27 = sadd.s32 %s26, 1
      %s28 = scalar_select %p25, %s26, %s27
      %p31 = pneg %p25
      %p32 = scmp.eq.s32.totalorder %s16, 1
      %p33 = por %p31, %p32
      %p34 = scmp.ne.s32.totalorder %s26, %s29
      %p35 = scmp.eq.s32.totalorder %s16, 0
      %p36 = por %p34, %p35
      %p37 = scmp.ne.s32.totalorder %s26, %s29
      %p38 = scmp.eq.s32.totalorder %s21, 1
      %p39 = por %p37, %p38
      %p40 = scmp.ne.s32.totalorder %s29, %s30
      %p41 = scmp.eq.s32.totalorder %s21, 0
      %p42 = por %p40, %p41
      %p43 = scmp.ne.s32.totalorder %s29, %s30
      %p44 = scmp.eq.s32.totalorder %s22, 1
      %p45 = por %p43, %p44
      %p47 = scmp.ne.s32.totalorder %s30, %s46
      %p48 = scmp.eq.s32.totalorder %s22, 0
      %p49 = por %p47, %p48
      %s51 = sadd.s32 %s50, 1
      %p54 = scmp.eq.s32.totalorder %s16, 1
      %p55 = scmp.ne.s32.totalorder %s50, %s52
      %p56 = scmp.eq.s32.totalorder %s16, 0
      %p57 = por %p55, %p56
      %p58 = scmp.ne.s32.totalorder %s50, %s52
      %p59 = scmp.eq.s32.totalorder %s21, 1
      %p60 = por %p58, %p59
      %p61 = scmp.ne.s32.totalorder %s52, %s53
      %p62 = scmp.eq.s32.totalorder %s21, 0
      %p63 = por %p61, %p62
      %p64 = scmp.ne.s32.totalorder %s52, %s53
      %p65 = scmp.eq.s32.totalorder %s22, 1
      %p66 = por %p64, %p65
      %p68 = scmp.ne.s32.totalorder %s53, %s67
      %p69 = scmp.eq.s32.totalorder %s22, 0
      %p70 = por %p68, %p69
      %s72 = sadd.s32 %s71, 1
      %p75 = scmp.eq.s32.totalorder %s16, 1
      %p76 = scmp.ne.s32.totalorder %s71, %s73
      %p77 = scmp.eq.s32.totalorder %s16, 0
      %p78 = por %p76, %p77
      %p79 = scmp.ne.s32.totalorder %s71, %s73
      %p80 = scmp.eq.s32.totalorder %s21, 1
      %p81 = por %p79, %p80
      %p82 = scmp.ne.s32.totalorder %s73, %s74
      %p83 = scmp.eq.s32.totalorder %s21, 0
      %p84 = por %p82, %p83
      %p85 = scmp.ne.s32.totalorder %s73, %s74
      %p86 = scmp.eq.s32.totalorder %s22, 1
      %p87 = por %p85, %p86
      %p89 = scmp.ne.s32.totalorder %s74, %s88
      %p90 = scmp.eq.s32.totalorder %s22, 0
      %p91 = por %p89, %p90
      %s93 = sadd.s32 %s92, 1
      %p96 = scmp.eq.s32.totalorder %s16, 1
      %p97 = scmp.ne.s32.totalorder %s92, %s94
      %p98 = scmp.eq.s32.totalorder %s16, 0
      %p99 = por %p97, %p98
      %p100 = scmp.ne.s32.totalorder %s92, %s94
      %p101 = scmp.eq.s32.totalorder %s21, 1
      %p102 = por %p100, %p101
      %p103 = scmp.ne.s32.totalorder %s94, %s95
      %p104 = scmp.eq.s32.totalorder %s21, 0
      %p105 = por %p103, %p104
      %p106 = scmp.ne.s32.totalorder %s94, %s95
      %p107 = scmp.eq.s32.totalorder %s22, 1
      %p108 = por %p106, %p107
      %p110 = scmp.ne.s32.totalorder %s95, %s109
      %p111 = scmp.eq.s32.totalorder %s22, 0
      %p112 = por %p110, %p111
      %s114 = sadd.s32 %s113, 1
      %p117 = scmp.eq.s32.totalorder %s16, 1
      %p118 = scmp.ne.s32.totalorder %s113, %s115
      %p119 = scmp.eq.s32.totalorder %s16, 0
      %p120 = por %p118, %p119
      %p121 = scmp.ne.s32.totalorder %s113, %s115
      %p122 = scmp.eq.s32.totalorder %s21, 1
      %p123 = por %p121, %p122
      %p124 = scmp.ne.s32.totalorder %s115, %s116
      %p125 = scmp.eq.s32.totalorder %s21, 0
      %p126 = por %p124, %p125
      %p127 = scmp.ne.s32.totalorder %s115, %s116
      %p128 = scmp.eq.s32.totalorder %s22, 1
      %p129 = por %p127, %p128
      %p131 = scmp.ne.s32.totalorder %s116, %s130
      %p132 = scmp.eq.s32.totalorder %s22, 0
      %p133 = por %p131, %p132
      %s135 = sadd.s32 %s134, 1
      %p138 = scmp.eq.s32.totalorder %s16, 1
      %p139 = scmp.ne.s32.totalorder %s134, %s136
      %p140 = scmp.eq.s32.totalorder %s16, 0
      %p141 = por %p139, %p140
      %p142 = scmp.ne.s32.totalorder %s134, %s136
      %p143 = scmp.eq.s32.totalorder %s21, 1
      %p144 = por %p142, %p143
      %p145 = scmp.ne.s32.totalorder %s136, %s137
      %p146 = scmp.eq.s32.totalorder %s21, 0
      %p147 = por %p145, %p146
      %p148 = scmp.ne.s32.totalorder %s136, %s137
      %p149 = scmp.eq.s32.totalorder %s22, 1
      %p150 = por %p148, %p149
      %p152 = scmp.ne.s32.totalorder %s137, %s151
      %p153 = scmp.eq.s32.totalorder %s22, 0
      %p154 = por %p152, %p153
      %s155 = ssub.s32 %s16, %s23
      %p156 = scmp.eq.s32.totalorder %s155, 0
      %s158 = sadd.s32 %s157, 1
      %s159 = scalar_select %p156, %s157, %s158
      %p162 = pneg %p156
      %p163 = scmp.eq.s32.totalorder %s16, 1
      %p164 = por %p162, %p163
      %p165 = scmp.ne.s32.totalorder %s157, %s160
      %p166 = scmp.eq.s32.totalorder %s16, 0
      %p167 = por %p165, %p166
      %p168 = scmp.ne.s32.totalorder %s157, %s160
      %p169 = scmp.eq.s32.totalorder %s21, 1
      %p170 = por %p168, %p169
      %p171 = scmp.ne.s32.totalorder %s160, %s161
      %p172 = scmp.eq.s32.totalorder %s21, 0
      %p173 = por %p171, %p172
      %p174 = scmp.ne.s32.totalorder %s160, %s161
      %p175 = scmp.eq.s32.totalorder %s22, 1
      %p176 = por %p174, %p175
      %p178 = scmp.ne.s32.totalorder %s161, %s177
      %p179 = scmp.eq.s32.totalorder %s22, 0
      %p180 = por %p178, %p179
      %p181 = scmp.le.s32.totalorder 1, %s16
      %p182 = scmp.lt.s32.totalorder %s16, 3
      %p183 = pnand %p181, %p182
      %p184 = pneg %p183
      // Predicated region
      $region9: #{tpu_custom_call.1} parent=5 // pred_check
        _
      $region10: #{tpu_custom_call.1} parent=5 // pred_check_branch
        %186 = sbr.rel (%p183) target = $region12
      $region11: #{tpu_custom_call.1} parent=5 // pred_region
        %s187 = ssub.s32 %s16, 1
        // Predicated region
        $region13: #{tpu_custom_call.1} parent=11 // pred_check
          %p188 = pneg %p63
        $region14: #{tpu_custom_call.1} parent=11 // pred_check_branch
          %190 = sbr.rel (%p188) target = $region16
        $region15: #{tpu_custom_call.1} parent=11 // pred_region
          _
        $region16: #{tpu_custom_call.1} parent=11 // pred_fallthru
          _
        // Predicated region
        $region17: #{tpu_custom_call.1} parent=11 // pred_check
          %p191 = pneg %p84
        $region18: #{tpu_custom_call.1} parent=11 // pred_check_branch
          %193 = sbr.rel (%p191) target = $region20
        $region19: #{tpu_custom_call.1} parent=11 // pred_region
          _
        $region20: #{tpu_custom_call.1} parent=11 // pred_fallthru
          _
        // Predicated region
        $region21: #{tpu_custom_call.1} parent=11 // pred_check
          %p194 = pneg %p105
        $region22: #{tpu_custom_call.1} parent=11 // pred_check_branch
          %196 = sbr.rel (%p194) target = $region24
        $region23: #{tpu_custom_call.1} parent=11 // pred_region
          _
        $region24: #{tpu_custom_call.1} parent=11 // pred_fallthru
          _
        // Predicated region
        $region25: #{tpu_custom_call.1} parent=11 // pred_check
          %p197 = pneg %p126
        $region26: #{tpu_custom_call.1} parent=11 // pred_check_branch
          %199 = sbr.rel (%p197) target = $region28
        $region27: #{tpu_custom_call.1} parent=11 // pred_region
          %s201 = ssub.s32 2048, 2048
          %202 = vsyncadd [#allocation3], %s201
          %s203 = sshll.u32 [#allocation2], 4
          %s204 = int_to_ptr.vmem [resolvable:$true] %s203
          %209 = dma.hbm_to_vmem [thread:$0]  %s4, 2048, %s204, [#allocation3], 256, 256, 16
        $region28: #{tpu_custom_call.1} parent=11 // pred_fallthru
          _
        // Predicated region
        $region29: #{tpu_custom_call.1} parent=11 // pred_check
          %p210 = pneg %p147
        $region30: #{tpu_custom_call.1} parent=11 // pred_check_branch
          %212 = sbr.rel (%p210) target = $region32
        $region31: #{tpu_custom_call.1} parent=11 // pred_region
          _
        $region32: #{tpu_custom_call.1} parent=11 // pred_fallthru
          _
      $region12: #{tpu_custom_call.1} parent=5 // pred_fallthru
        _
      %p213 = scmp.lt.s32.totalorder %s16, 2
      // Predicated region
      $region33: #{tpu_custom_call.1} parent=5 // pred_check
        %p214 = pneg %p213
      $region34: #{tpu_custom_call.1} parent=5 // pred_check_branch
        %216 = sbr.rel (%p214) target = $region36
      $region35: #{tpu_custom_call.1} parent=5 // pred_region
        // Predicated region
        $region37: #{tpu_custom_call.1} parent=35 // pred_check
          %p217 = pneg %p36
        $region38: #{tpu_custom_call.1} parent=35 // pred_check_branch
          %219 = sbr.rel (%p217) target = $region40
        $region39: #{tpu_custom_call.1} parent=35 // pred_region
          %p220 = scmp.lt.s32.totalorder %s16, 1
          %s221 = scalar_select %p220, %s16, 1
          %s222 = smul.addr %s221, 4
          %s223 = smul.addr %s222, 4
          %s224 = scalar_lea.vmem %s0, %s223
        $region40: #{tpu_custom_call.1} parent=35 // pred_fallthru
          _
      $region36: #{tpu_custom_call.1} parent=5 // pred_fallthru
        _
      %p225 = scmp.le.s32.totalorder 1, %s16
      %p226 = scmp.lt.s32.totalorder %s16, 3
      %p227 = pnand %p225, %p226
      %p228 = pneg %p227
      // Predicated region
      $region41: #{tpu_custom_call.1} parent=5 // pred_check
        _
      $region42: #{tpu_custom_call.1} parent=5 // pred_check_branch
        %230 = sbr.rel (%p227) target = $region44
      $region43: #{tpu_custom_call.1} parent=5 // pred_region
        %s231 = ssub.s32 %s16, 1
        // Predicated region
        $region45: #{tpu_custom_call.1} parent=43 // pred_check
          %p232 = pneg %p126
        $region46: #{tpu_custom_call.1} parent=43 // pred_check_branch
          %234 = sbr.rel (%p232) target = $region48
        $region47: #{tpu_custom_call.1} parent=43 // pred_region
          %235 = dma.done [#allocation3], 2048
        $region48: #{tpu_custom_call.1} parent=43 // pred_fallthru
          _
        %p236 = scmp.lt.s32.totalorder %s21, 1
        %s237 = scalar_select %p236, %s21, 1
        %s238 = smul.addr %s237, 4
        %s239 = smul.addr %s238, 4
        %s240 = scalar_lea.vmem %s0, %s239
        %p241 = pneg %p42
        %p242 = pneg %p39
        %p243 = pneg %p63
        %p244 = pneg %p60
        %p245 = pneg %p84
        %p246 = pneg %p81
        %p247 = pneg %p105
        %p248 = pneg %p102
        %p249 = pneg %p126
        %p250 = pneg %p123
        %p251 = pneg %p147
        %p252 = pneg %p144
        %p253 = pneg %p173
        %p254 = pneg %p170
        %s255 = sand.u32 %s160, 1
        %s256 = scalar_lea.sflag [#allocation4], %s255
        %s257 = sand.u32 %s160, 1
        %s258 = scalar_lea.vmem [#allocation5], %s257
        %p259 = scmp.lt.s32.totalorder %s21, 1
        %s260 = scalar_select %p259, %s21, 1
        %s261 = smul.addr %s260, 4
        %s262 = smul.addr %s261, 4
        %s263 = scalar_lea.vmem %s0, %s262
        %v265 = vld [vmem:[%s263] sm:$0xff]
        %v266 = vld [vmem:[%s263 + $0x8] sm:$0xff]
        %v267 = vld [vmem:[%s1] sm:$0xf]
        %v268 = vld [vmem:[%s1 + $0x4] sm:$0xf]
        %v269 = vld [vmem:[%s1 + $0x8] sm:$0xf]
        %v270 = vld [vmem:[%s1 + $0xc] sm:$0xf]
        %v275 = vunpack.c.l.b16 %v267
        %v276 = vunpack.c.l.b16 %v268
        %v277 = vunpack.c.l.b16 %v269
        %v278 = vunpack.c.l.b16 %v270
        %v279 = vpack.c.b16 %v276, %v275
        %v280 = vpack.c.b16 %v278, %v277
        %v283 = vunpack.c.l.b16 %v265
        %v284 = vunpack.c.h.b16 %v265
        %v285 = vunpack.c.l.b16 %v266
        %v286 = vunpack.c.h.b16 %v266
        %v287 = vpack.c.b16 %v285, %v283
        %v288 = vpack.c.b16 %v286, %v284
        %vm291 = vcmask 130048
        %v293 = vsel %vm291, %v279, 0
        %v296 = vsel %vm291, %v280, 0
        %298 = vmatprep.subr.bf16.mxu0 %v288
        %299 = vmatpush1.bf16.msra.mxu0 %v287
        %300 = vmatprep.subr.bf16.mxu0 0
        %301 = vmatpush1.bf16.msra.mxu0 0
        %302 = vmatprep.subr.bf16.mxu0 0
        %303 = vmatpush1.bf16.msra.mxu0 0
        %304 = vmatprep.subr.bf16.mxu0 0
        %305 = vmatpush1.bf16.msra.mxu0 0
        %306 = vmatprep.subr.bf16.mxu0 0
        %307 = vmatpush1.bf16.msra.mxu0 0
        %308 = vmatprep.subr.bf16.mxu0 0
        %309 = vmatpush1.bf16.msra.mxu0 0
        %310 = vmatprep.subr.bf16.mxu0 0
        %311 = vmatpush1.bf16.msra.mxu0 0
        %312 = vmatprep.subr.bf16.mxu0 0
        %313 = vmatpush1.bf16.msra.mxu0 0
        %314 = vmatprep.subr.bf16.mxu0 0
        %315 = vmatpush1.bf16.msra.mxu0 0
        %316 = vmatprep.subr.bf16.mxu0 0
        %317 = vmatpush1.bf16.msra.mxu0 0
        %318 = vmatprep.subr.bf16.mxu0 0
        %319 = vmatpush1.bf16.msra.mxu0 0
        %320 = vmatprep.subr.bf16.mxu0 0
        %321 = vmatpush1.bf16.msra.mxu0 0
        %322 = vmatprep.subr.bf16.mxu0 0
        %323 = vmatpush1.bf16.msra.mxu0 0
        %324 = vmatprep.subr.bf16.mxu0 0
        %325 = vmatpush1.bf16.msra.mxu0 0
        %326 = vmatprep.subr.bf16.mxu0 0
        %327 = vmatpush1.bf16.msra.mxu0 0
        %328 = vmatprep.subr.bf16.mxu0 0
        %329 = vmatpush1.bf16.msra.mxu0 0
        %330 = vmatprep.mubr.bf16.mxu0 0
        %331 = vmatmul.mubr.bf16.gmra.mrb[0].mxu0 %v293
        %v332 = vpop.f32.mrb[0].mxu0
        %v333 = vadd.f32 0.0, %v332
        %v334 = vpop.f32.mrb[0].mxu0
        %v335 = vadd.f32 0.0, %v334
        %v336 = vpop.f32.mrb[0].mxu0
        %v337 = vadd.f32 0.0, %v336
        %v338 = vpop.f32.mrb[0].mxu0
        %v339 = vadd.f32 0.0, %v338
        %340 = vmatprep.mubr.bf16.mxu0 0
        %341 = vmatmul.mubr.bf16.gmra.mrb[0].mxu0 %v296
        %v342 = vpop.f32.mrb[0].mxu0
        %v343 = vadd.f32 0.0, %v342
        %v344 = vpop.f32.mrb[0].mxu0
        %v345 = vadd.f32 0.0, %v344
        %v346 = vpop.f32.mrb[0].mxu0
        %v347 = vadd.f32 0.0, %v346
        %v348 = vpop.f32.mrb[0].mxu0
        %v349 = vadd.f32 0.0, %v348
        %350 = vdwg.mxu0
        %v351 = vld [vmem:[%s2] sm:$0xff]
        %v352 = vld [vmem:[%s2 + $0x8] sm:$0xff]
        %v353 = vld [vmem:[%s2 + $0x10] sm:$0xff]
        %v354 = vld [vmem:[%s2 + $0x18] sm:$0xff]
        %356 = vset.pattern.permute.xlu0 0
        %357 = vperm.xlu0 %356, %v351
        %v358 = vpop.permute.xlu0 %357
        %361 = vset.pattern.permute.xlu0 0
        %362 = vperm.xlu0 %361, %v352
        %v363 = vpop.permute.xlu0 %362
        %366 = vset.pattern.permute.xlu0 0
        %367 = vperm.xlu0 %366, %v353
        %v368 = vpop.permute.xlu0 %367
        %371 = vset.pattern.permute.xlu0 0
        %372 = vperm.xlu0 %371, %v354
        %v373 = vpop.permute.xlu0 %372
        %v375 = vmul.f32 %v333, %v358
        %v376 = vmul.f32 %v335, %v358
        %v377 = vmul.f32 %v337, %v363
        %v378 = vmul.f32 %v339, %v363
        %v379 = vmul.f32 %v343, %v368
        %v380 = vmul.f32 %v345, %v368
        %v381 = vmul.f32 %v347, %v373
        %v382 = vmul.f32 %v349, %v373
        %v383 = vld [vmem:[%s3] sm:$0xff]
        %v384 = vld [vmem:[%s3 + $0x8] sm:$0xff]
        %v385 = vld [vmem:[%s3 + $0x10] sm:$0xff]
        %v386 = vld [vmem:[%s3 + $0x18] sm:$0xff]
        %388 = vset.pattern.permute.xlu0 0
        %389 = vperm.xlu0 %388, %v383
        %v390 = vpop.permute.xlu0 %389
        %393 = vset.pattern.permute.xlu0 0
        %394 = vperm.xlu0 %393, %v384
        %v395 = vpop.permute.xlu0 %394
        %398 = vset.pattern.permute.xlu0 0
        %399 = vperm.xlu0 %398, %v385
        %v400 = vpop.permute.xlu0 %399
        %403 = vset.pattern.permute.xlu0 0
        %404 = vperm.xlu0 %403, %v386
        %v405 = vpop.permute.xlu0 %404
        %v407 = vadd.f32 %v375, %v390
        %v408 = vadd.f32 %v376, %v390
        %v409 = vadd.f32 %v377, %v395
        %v410 = vadd.f32 %v378, %v395
        %v411 = vadd.f32 %v379, %v400
        %v412 = vadd.f32 %v380, %v400
        %v413 = vadd.f32 %v381, %v405
        %v414 = vadd.f32 %v382, %v405
        %v415 = vmax.f32 %v407, 0.0
        %v416 = vmax.f32 %v408, 0.0
        %v417 = vmax.f32 %v409, 0.0
        %v418 = vmax.f32 %v410, 0.0
        %v419 = vmax.f32 %v411, 0.0
        %v420 = vmax.f32 %v412, 0.0
        %v421 = vmax.f32 %v413, 0.0
        %v422 = vmax.f32 %v414, 0.0
        %v423 = vld [vmem:[#allocation2] sm:$0xff]
        %v424 = vld [vmem:[#allocation2 + $0x8] sm:$0xff]
        %v425 = vld [vmem:[#allocation2 + $0x10] sm:$0xff]
        %v426 = vld [vmem:[#allocation2 + $0x18] sm:$0xff]
        %v427 = vld [vmem:[#allocation2 + $0x20] sm:$0xff]
        %v428 = vld [vmem:[#allocation2 + $0x28] sm:$0xff]
        %v429 = vld [vmem:[#allocation2 + $0x30] sm:$0xff]
        %v430 = vld [vmem:[#allocation2 + $0x38] sm:$0xff]
        %v431 = vmul.f32 %v415, %v423
        %v432 = vmul.f32 %v416, %v424
        %v433 = vmul.f32 %v417, %v425
        %v434 = vmul.f32 %v418, %v426
        %v435 = vmul.f32 %v419, %v427
        %v436 = vmul.f32 %v420, %v428
        %v437 = vmul.f32 %v421, %v429
        %v438 = vmul.f32 %v422, %v430
        %v439 = vadd.f32 %v431, %v432
        %440 = vadd.xlane.f32.xlu0 %v439
        %v441 = vpop.xlane.xlu0 %440
        %v442 = vadd.f32 %v433, %v434
        %443 = vadd.xlane.f32.xlu0 %v442
        %v444 = vpop.xlane.xlu0 %443
        %v445 = vadd.f32 %v435, %v436
        %446 = vadd.xlane.f32.xlu0 %v445
        %v447 = vpop.xlane.xlu0 %446
        %v448 = vadd.f32 %v437, %v438
        %449 = vadd.xlane.f32.xlu0 %v448
        %v450 = vpop.xlane.xlu0 %449
        %v451 = vadd.f32 %v441, %v444
        %v452 = vadd.f32 %v451, %v447
        %v453 = vadd.f32 %v452, %v450
        %v454 = vrot.slane %v453, 4
        %v455 = vadd.f32 %v453, %v454
        %v456 = vrot.slane %v455, 2
        %v457 = vadd.f32 %v455, %v456
        %v458 = vrot.slane %v457, 1
        %v459 = vadd.f32 %v457, %v458
        %v460 = vmax.f32 %v459, 0.0
        %v461 = vld [vmem:[%s5] sm:$0x1]
        %v462 = vmul.f32 %v460, %v461
        %v463 = vadd.f32 %v462, 0.0
        %s464 = scalar_lea.vmem [#allocation2], 64
        %v465 = vld [vmem:[%s464] sm:$0xff]
        %v466 = vld [vmem:[%s464 + $0x8] sm:$0xff]
        %v467 = vld [vmem:[%s464 + $0x10] sm:$0xff]
        %v468 = vld [vmem:[%s464 + $0x18] sm:$0xff]
        %v469 = vld [vmem:[%s464 + $0x20] sm:$0xff]
        %v470 = vld [vmem:[%s464 + $0x28] sm:$0xff]
        %v471 = vld [vmem:[%s464 + $0x30] sm:$0xff]
        %v472 = vld [vmem:[%s464 + $0x38] sm:$0xff]
        %v473 = vmul.f32 %v415, %v465
        %v474 = vmul.f32 %v416, %v466
        %v475 = vmul.f32 %v417, %v467
        %v476 = vmul.f32 %v418, %v468
        %v477 = vmul.f32 %v419, %v469
        %v478 = vmul.f32 %v420, %v470
        %v479 = vmul.f32 %v421, %v471
        %v480 = vmul.f32 %v422, %v472
        %v481 = vadd.f32 %v473, %v474
        %482 = vadd.xlane.f32.xlu0 %v481
        %v483 = vpop.xlane.xlu0 %482
        %v484 = vadd.f32 %v475, %v476
        %485 = vadd.xlane.f32.xlu0 %v484
        %v486 = vpop.xlane.xlu0 %485
        %v487 = vadd.f32 %v477, %v478
        %488 = vadd.xlane.f32.xlu0 %v487
        %v489 = vpop.xlane.xlu0 %488
        %v490 = vadd.f32 %v479, %v480
        %491 = vadd.xlane.f32.xlu0 %v490
        %v492 = vpop.xlane.xlu0 %491
        %v493 = vadd.f32 %v483, %v486
        %v494 = vadd.f32 %v493, %v489
        %v495 = vadd.f32 %v494, %v492
        %v496 = vrot.slane %v495, 4
        %v497 = vadd.f32 %v495, %v496
        %v498 = vrot.slane %v497, 2
        %v499 = vadd.f32 %v497, %v498
        %v500 = vrot.slane %v499, 1
        %v501 = vadd.f32 %v499, %v500
        %v502 = vmax.f32 %v501, 0.0
        %v503 = vld [vmem:[%s5 + $0x1] sm:$0x1]
        %v504 = vmul.f32 %v502, %v503
        %v505 = vadd.f32 %v463, %v504
        %v506 = vxor.u32 %v505, 2147483648
        %v507 = vmul.f32 %v506, 1.442695
        %v508 = vpow.pop %v507
        %v509 = vadd.f32 %v508, 1.0
        %v510 = vrcp.pop %v509
        %v511 = vmul.f32 1.0, %v510
        %vm512 = vcmask 253952
        %513 = vst.msk [vmem:[%s258] sm:$0x1] %vm512, %v511
        %s514 = sand.u32 %s160, 1
        %s515 = scalar_lea.sflag [#allocation4], %s514
        %s516 = sand.u32 %s160, 1
        %s517 = scalar_lea.vmem [#allocation5], %s516
        // Predicated region
        $region49: #{tpu_custom_call.1} parent=43 // pred_check
          %p518 = pneg %p170
        $region50: #{tpu_custom_call.1} parent=43 // pred_check_branch
          %520 = sbr.rel (%p518) target = $region52
        $region51: #{tpu_custom_call.1} parent=43 // pred_region
          %s522 = ssub.s32 16, 16
          %523 = vsyncadd %s515, %s522
          %s524 = smul.addr %s21, 16
          %s525 = scalar_lea.hbm %s6, %s524
          %s527 = sshll.u32 %s517, 4
          %s528 = int_to_ptr.vmem [resolvable:$true] %s527
          %530 = dma.vmem_to_hbm [thread:$0]  %s528, 16, %s525, %s515
        $region52: #{tpu_custom_call.1} parent=43 // pred_fallthru
          _
      $region44: #{tpu_custom_call.1} parent=5 // pred_fallthru
        _
      %p531 = scmp.le.s32.totalorder 2, %s16
      // Predicated region
      $region53: #{tpu_custom_call.1} parent=5 // pred_check
        %p532 = pneg %p531
      $region54: #{tpu_custom_call.1} parent=5 // pred_check_branch
        %534 = sbr.rel (%p532) target = $region56
      $region55: #{tpu_custom_call.1} parent=5 // pred_region
        %s535 = ssub.s32 %s16, 2
        // Predicated region
        $region57: #{tpu_custom_call.1} parent=55 // pred_check
          %p536 = pneg %p176
        $region58: #{tpu_custom_call.1} parent=55 // pred_check_branch
          %538 = sbr.rel (%p536) target = $region60
        $region59: #{tpu_custom_call.1} parent=55 // pred_region
          %s539 = sand.u32 %s161, 1
          %s540 = scalar_lea.sflag [#allocation4], %s539
          %s541 = sand.u32 %s161, 1
          %s542 = scalar_lea.vmem [#allocation5], %s541
          %543 = dma.done %s540, 16
        $region60: #{tpu_custom_call.1} parent=55 // pred_fallthru
          _
      $region56: #{tpu_custom_call.1} parent=5 // pred_fallthru
        _
    $region6: #{tpu_custom_call.1} parent=1 // loop_footer
      %s20 = sadd.s32 1, %s16
    $region7: #{tpu_custom_call.1} parent=1 // loop_footer_branch
      %15 = sbr.rel target = $region3
    $region8: #{tpu_custom_call.1} parent=1 // loop_exit
      _
    %544 = vsyncpa [#allocation3], 1
    %s545 = scalar_lea.sflag [#allocation3], 1
    %546 = vsyncpa %s545, 1
    %547 = vsyncpa [#allocation4], 1
    %s548 = scalar_lea.sflag [#allocation4], 1
    %549 = vsyncpa %s548, 1

</llo_original>
